<compile_context>
chip_gen: v7x
topology: tpu7x:2x2x1
jax: 0.10.0
libtpu: 0.0.40
codegen_flags: <defaults>
</compile_context>

<pallas_src>
import functools

import jax
import jax.numpy as jnp
from jax.experimental import pallas as pl
from jax.experimental.pallas import tpu as pltpu


def _make_focal_kernel(gamma, alpha):
    """Build the per-tile kernel with compile-time gamma / alpha baked in."""

    def kernel(preds_ref, labels_ref, rowsum_ref):
        x = preds_ref[...].astype(jnp.float32)   # [tm, C] logits
        y = labels_ref[...].astype(jnp.float32)  # [tm, C] one-hot / soft labels

        # log_softmax along the class (lane) axis.
        m = jnp.max(x, axis=-1, keepdims=True)
        shifted = x - m
        sum_exp = jnp.sum(jnp.exp(shifted), axis=-1, keepdims=True)
        log_p = shifted - jnp.log(sum_exp)
        p = jnp.exp(log_p)

        one_minus_p = 1.0 - p
        if gamma == 2.0:
            focal = one_minus_p * one_minus_p
        elif gamma == 1.0:
            focal = one_minus_p
        elif gamma == 0.0:
            focal = jnp.ones_like(p)
        else:
            focal = jnp.power(one_minus_p, jnp.float32(gamma))

        loss = -focal * log_p * y

        if alpha is not None:
            # alpha_fac = [1-alpha, alpha, alpha, ...] along the class axis.
            lane = jax.lax.broadcasted_iota(jnp.int32, loss.shape, dimension=1)
            alpha_fac = jnp.where(lane == 0, jnp.float32(1.0 - alpha),
                                  jnp.float32(alpha))
            loss = loss * alpha_fac

        # Per-row partial sums; the (cheap, scalar) final reduction happens in JAX.
        rowsum_ref[...] = jnp.sum(loss, axis=-1, keepdims=True)

    return kernel


@functools.partial(jax.jit, static_argnames=("gamma", "alpha", "size_average",
                                             "tile_rows"))
def focal_loss(preds, labels, *, gamma=2.0, alpha=None, size_average=True,
               tile_rows=None):
    """Pallas implementation of FocalLoss.forward(preds, labels) (softmax path)."""
    preds = preds.reshape(-1, preds.shape[-1])
    labels = labels.reshape(-1, labels.shape[-1])
    assert preds.shape == labels.shape
    B, C = preds.shape
    n_elements = B * C

    if tile_rows is None:
        # Target ~2 MiB (f32) per input block; 2 inputs x 2 pipeline buffers plus
        # the tiny output comfortably fits v7x's 64 MiB VMEM (and v5e/v6e's 128 MiB).
        target_rows = max(8, (2 * 1024 * 1024) // (4 * C))
        tile_rows = min(((B + 7) // 8) * 8, (target_rows // 8) * 8)
        tile_rows = max(8, int(tile_rows))

    # Pad rows to a multiple of tile_rows. Zero-padded labels contribute exactly
    # zero loss, so padding never contaminates the reduction.
    num_tiles = pl.cdiv(B, tile_rows)
    Bp = num_tiles * tile_rows
    if Bp != B:
        pad = Bp - B
        preds = jnp.pad(preds, ((0, pad), (0, 0)))
        labels = jnp.pad(labels, ((0, pad), (0, 0)))

    row_sums = pl.pallas_call(
        _make_focal_kernel(gamma, alpha),
        out_shape=jax.ShapeDtypeStruct((Bp, 1), jnp.float32),
        grid=(num_tiles,),
        in_specs=[
            pl.BlockSpec((tile_rows, C), lambda i: (i, 0)),
            pl.BlockSpec((tile_rows, C), lambda i: (i, 0)),
        ],
        out_specs=pl.BlockSpec((tile_rows, 1), lambda i: (i, 0)),
        compiler_params=pltpu.CompilerParams(
            dimension_semantics=("parallel",),
        ),
    )(preds, labels)

    total = jnp.sum(row_sums)
    if size_average:
        return total / jnp.float32(n_elements)
    return total


def _reference_focal_loss(preds, labels, gamma=2.0):
    """Pure-JAX reference mirroring the PyTorch softmax_focal_loss + mean()."""
    log_p = jax.nn.log_softmax(preds.astype(jnp.float32), axis=1)
    p = jnp.exp(log_p)
    loss = -((1.0 - p) ** gamma) * log_p * labels.astype(jnp.float32)
    return loss.mean()


if __name__ == "__main__":
    key = jax.random.PRNGKey(0)
    k1, k2 = jax.random.split(key)

    # Small shapes: batch=16 samples, class_num=128 (lane-aligned class axis).
    B, C = 16, 128
    preds = jax.random.normal(k1, (B, C), dtype=jnp.float32)
    label_idx = jax.random.randint(k2, (B,), 0, C)
    labels = jax.nn.one_hot(label_idx, C, dtype=jnp.float32)

    # tile_rows=8 -> 2 grid steps, exercising the parallel (multi-step) path.
    out = focal_loss(preds, labels, gamma=2.0, tile_rows=8)
    out = jax.block_until_ready(out)

    ref = _reference_focal_loss(preds, labels, gamma=2.0)
    assert out.shape == ()
    assert jnp.allclose(out, ref, rtol=1e-5, atol=1e-6), (out, ref)

    print("KERNEL_OK")
</pallas_src>

<mosaic_0001>
module attributes {stable_mosaic.version = 11 : i64} {
  func.func @kernel(%arg0: i32, %arg1: memref<8x128xf32, #tpu.memory_space<vmem>>, %arg2: memref<8x128xf32, #tpu.memory_space<vmem>>, %arg3: memref<8x1xf32, #tpu.memory_space<vmem>>) attributes {dimension_semantics = [#tpu.dimension_semantics<parallel>], iteration_bounds = array<i64: 2>, scalar_prefetch = 0 : i64, scratch_operands = 0 : i64, tpu.core_type = #tpu.core_type<tc>, window_params = [{transform_indices = @transform_0, window_bounds = array<i64: 8, 128>}, {transform_indices = @transform_1, window_bounds = array<i64: 8, 128>}, {transform_indices = @transform_2, window_bounds = array<i64: 8, 1>}]} {
    %c0 = arith.constant 0 : index
    %c0_0 = arith.constant 0 : index
    %0 = vector.load %arg1[%c0, %c0_0] : memref<8x128xf32, #tpu.memory_space<vmem>>, vector<8x128xf32>
    %c0_1 = arith.constant 0 : index
    %c0_2 = arith.constant 0 : index
    %1 = vector.load %arg2[%c0_1, %c0_2] : memref<8x128xf32, #tpu.memory_space<vmem>>, vector<8x128xf32>
    %cst = arith.constant dense<0xFF800000> : vector<8xf32>
    %2 = vector.multi_reduction <maximumf>, %0, %cst [1] : vector<8x128xf32> to vector<8xf32>
    %3 = vector.shape_cast %2 : vector<8xf32> to vector<8x1xf32>
    %4 = vector.broadcast %3 : vector<8x1xf32> to vector<8x128xf32>
    %5 = arith.subf %0, %4 : vector<8x128xf32>
    %6 = math.exp %5 : vector<8x128xf32>
    %cst_3 = arith.constant dense<0.000000e+00> : vector<8xf32>
    %7 = vector.multi_reduction <add>, %6, %cst_3 [1] : vector<8x128xf32> to vector<8xf32>
    %8 = vector.shape_cast %7 : vector<8xf32> to vector<8x1xf32>
    %9 = math.log %8 : vector<8x1xf32>
    %10 = vector.broadcast %9 : vector<8x1xf32> to vector<8x128xf32>
    %11 = arith.subf %5, %10 : vector<8x128xf32>
    %12 = math.exp %11 : vector<8x128xf32>
    %cst_4 = arith.constant 1.000000e+00 : f32
    %13 = vector.broadcast %cst_4 : f32 to vector<8x128xf32>
    %14 = arith.subf %13, %12 : vector<8x128xf32>
    %15 = arith.mulf %14, %14 : vector<8x128xf32>
    %cst_5 = arith.constant 0.000000e+00 : f32
    %16 = vector.broadcast %cst_5 : f32 to vector<8x128xf32>
    %17 = arith.subf %16, %15 : vector<8x128xf32>
    %18 = arith.mulf %17, %11 : vector<8x128xf32>
    %19 = arith.mulf %18, %1 : vector<8x128xf32>
    %cst_6 = arith.constant dense<0.000000e+00> : vector<8xf32>
    %20 = vector.multi_reduction <add>, %19, %cst_6 [1] : vector<8x128xf32> to vector<8xf32>
    %21 = vector.shape_cast %20 : vector<8xf32> to vector<8x1xf32>
    %c0_7 = arith.constant 0 : index
    %c0_8 = arith.constant 0 : index
    %22 = vector.load %arg3[%c0_7, %c0_8] : memref<8x1xf32, #tpu.memory_space<vmem>>, vector<8x1xf32>
    tpu.vector_store %arg3[%c0_7, %c0_8], %21 {strides = array<i32>} : memref<8x1xf32, #tpu.memory_space<vmem>>, vector<8x1xf32>,
    return
  }
  func.func @transform_0(%arg0: i32) -> (i32, i32) {
    %c0_i32 = arith.constant 0 : i32
    %c0_i32_0 = arith.constant 0 : i32
    return %arg0, %c0_i32 : i32, i32
  }
  func.func @transform_1(%arg0: i32) -> (i32, i32) {
    %c0_i32 = arith.constant 0 : i32
    %c0_i32_0 = arith.constant 0 : i32
    return %arg0, %c0_i32 : i32, i32
  }
  func.func @transform_2(%arg0: i32) -> (i32, i32) {
    %c0_i32 = arith.constant 0 : i32
    %c0_i32_0 = arith.constant 0 : i32
    return %arg0, %c0_i32 : i32, i32
  }
}

</mosaic_0001>

<llo_original>
// kernel: focal_loss.1
$region0: #{focal_loss.1}
  #allocation0 [shape = 'u32[]', space=smem, size = 0x4, offset = 0x4, fixed_abs, tag = 'smem constant byte address 0x4 - core index']
  #allocation1 [shape = 'u32[144,128]{1,0:T(1,128)}', space=vmem, size = 0x12000, scoped, tag = 'internal scratch']
  %s0 = inlined_call_operand.hbm [shape: f32[16,128], index: 0, kind: input, shape index: {}]
  %s1 = inlined_call_operand.hbm [shape: f32[16,128], index: 1, kind: input, shape index: {}]
  %s2 = inlined_call_operand.vmem [shape: f32[16,1], index: 2, kind: output, shape index: {}]
  %s3 = sld [smem:[#allocation0]]
  $region49: #{focal_loss.1} parent=0
    _
  %s5 = ssub.s32 1, %s3
  %s6 = scalar_select 0, %s5, %s3
  $region1: #{focal_loss.1} parent=0
    #allocation2 [shape = 'u8[8192]{0}', space=vmem, size = 0x2000, scoped, tag = 'input window, operand 0']
    #allocation3 [shape = 's32[2]{0}', space=sflag, size = 0x8, scoped, tag = 'scoped memory for focal_loss.1']
    #allocation4 [shape = 'u8[8192]{0}', space=vmem, size = 0x2000, scoped, tag = 'input window, operand 1']
    #allocation5 [shape = 's32[2]{0}', space=sflag, size = 0x8, scoped, tag = 'scoped memory for focal_loss.1']
    %7 = vsyncpa [#allocation3], 0
    %s8 = scalar_lea.sflag [#allocation3], 1
    %9 = vsyncpa %s8, 0
    %10 = vsyncpa [#allocation5], 0
    %s11 = scalar_lea.sflag [#allocation5], 1
    %12 = vsyncpa %s11, 0
    loop: start=0, step=1, limit=4
    $region2: #{focal_loss.1} parent=1 // loop_pre_header
      _
    $region3: #{focal_loss.1} parent=1 // loop_header
      %s14 = sphi 0, %s18
      %p15 = scmp.ge.s32.totalorder %s14, 4
      %s24 = sphi 0, %s26
      %s27 = sphi 0, %s24
      %s28 = sphi 0, %s27
      %s44 = sphi 0, %s28
      %s50 = sphi 0, %s52
      %s53 = sphi 0, %s50
      %s54 = sphi 0, %s53
      %s70 = sphi 0, %s54
      %s76 = sphi 0, %s78
      %s79 = sphi 0, %s76
      %s80 = sphi 0, %s79
      %s96 = sphi 0, %s80
    $region4: #{focal_loss.1} parent=1 // loop_header_branch
      %17 = sbr.rel (%p15) target = $region8
    $region5: #{focal_loss.1} parent=1 // loop_body
      %s19 = ssub.s32 %s14, 1
      %s20 = ssub.s32 %s14, 2
      %s21 = sadd.s32 %s14, 1
      %s22 = ssub.s32 %s14, %s21
      %p23 = scmp.eq.s32.totalorder %s22, 0
      %s25 = sadd.s32 %s24, 1
      %s26 = scalar_select %p23, %s24, %s25
      %p29 = pneg %p23
      %p30 = scmp.eq.s32.totalorder %s14, 1
      %p31 = por %p29, %p30
      %p32 = scmp.ne.s32.totalorder %s24, %s27
      %p33 = scmp.eq.s32.totalorder %s14, 0
      %p34 = por %p32, %p33
      %p35 = scmp.ne.s32.totalorder %s24, %s27
      %p36 = scmp.eq.s32.totalorder %s19, 1
      %p37 = por %p35, %p36
      %p38 = scmp.ne.s32.totalorder %s27, %s28
      %p39 = scmp.eq.s32.totalorder %s19, 0
      %p40 = por %p38, %p39
      %p41 = scmp.ne.s32.totalorder %s27, %s28
      %p42 = scmp.eq.s32.totalorder %s20, 1
      %p43 = por %p41, %p42
      %p45 = scmp.ne.s32.totalorder %s28, %s44
      %p46 = scmp.eq.s32.totalorder %s20, 0
      %p47 = por %p45, %p46
      %s48 = ssub.s32 %s14, %s21
      %p49 = scmp.eq.s32.totalorder %s48, 0
      %s51 = sadd.s32 %s50, 1
      %s52 = scalar_select %p49, %s50, %s51
      %p55 = pneg %p49
      %p56 = scmp.eq.s32.totalorder %s14, 1
      %p57 = por %p55, %p56
      %p58 = scmp.ne.s32.totalorder %s50, %s53
      %p59 = scmp.eq.s32.totalorder %s14, 0
      %p60 = por %p58, %p59
      %p61 = scmp.ne.s32.totalorder %s50, %s53
      %p62 = scmp.eq.s32.totalorder %s19, 1
      %p63 = por %p61, %p62
      %p64 = scmp.ne.s32.totalorder %s53, %s54
      %p65 = scmp.eq.s32.totalorder %s19, 0
      %p66 = por %p64, %p65
      %p67 = scmp.ne.s32.totalorder %s53, %s54
      %p68 = scmp.eq.s32.totalorder %s20, 1
      %p69 = por %p67, %p68
      %p71 = scmp.ne.s32.totalorder %s54, %s70
      %p72 = scmp.eq.s32.totalorder %s20, 0
      %p73 = por %p71, %p72
      %s74 = ssub.s32 %s14, %s21
      %p75 = scmp.eq.s32.totalorder %s74, 0
      %s77 = sadd.s32 %s76, 1
      %s78 = scalar_select %p75, %s76, %s77
      %p81 = pneg %p75
      %p82 = scmp.eq.s32.totalorder %s14, 1
      %p83 = por %p81, %p82
      %p84 = scmp.ne.s32.totalorder %s76, %s79
      %p85 = scmp.eq.s32.totalorder %s14, 0
      %p86 = por %p84, %p85
      %p87 = scmp.ne.s32.totalorder %s76, %s79
      %p88 = scmp.eq.s32.totalorder %s19, 1
      %p89 = por %p87, %p88
      %p90 = scmp.ne.s32.totalorder %s79, %s80
      %p91 = scmp.eq.s32.totalorder %s19, 0
      %p92 = por %p90, %p91
      %p93 = scmp.ne.s32.totalorder %s79, %s80
      %p94 = scmp.eq.s32.totalorder %s20, 1
      %p95 = por %p93, %p94
      %p97 = scmp.ne.s32.totalorder %s80, %s96
      %p98 = scmp.eq.s32.totalorder %s20, 0
      %p99 = por %p97, %p98
      %p100 = scmp.le.s32.totalorder 1, %s14
      %p101 = scmp.lt.s32.totalorder %s14, 3
      %p102 = pnand %p100, %p101
      %p103 = pneg %p102
      // Predicated region
      $region9: #{focal_loss.1} parent=5 // pred_check
        _
      $region10: #{focal_loss.1} parent=5 // pred_check_branch
        %105 = sbr.rel (%p102) target = $region12
      $region11: #{focal_loss.1} parent=5 // pred_region
        %s106 = ssub.s32 %s14, 1
      $region12: #{focal_loss.1} parent=5 // pred_fallthru
        _
      %p107 = scmp.lt.s32.totalorder %s14, 2
      // Predicated region
      $region13: #{focal_loss.1} parent=5 // pred_check
        %p108 = pneg %p107
      $region14: #{focal_loss.1} parent=5 // pred_check_branch
        %110 = sbr.rel (%p108) target = $region16
      $region15: #{focal_loss.1} parent=5 // pred_region
        // Predicated region
        $region17: #{focal_loss.1} parent=15 // pred_check
          %p111 = pneg %p34
        $region18: #{focal_loss.1} parent=15 // pred_check_branch
          %113 = sbr.rel (%p111) target = $region20
        $region19: #{focal_loss.1} parent=15 // pred_region
          %s114 = sand.u32 %s24, 1
          %s115 = scalar_lea.sflag [#allocation3], %s114
          %s116 = sand.u32 %s24, 1
          %s117 = smul.addr %s116, 8
          %s118 = scalar_lea.vmem [#allocation2], %s117
          %s120 = ssub.s32 128, 128
          %121 = vsyncadd %s115, %s120
          %s122 = smul.addr %s14, 128
          %s123 = scalar_lea.hbm %s0, %s122
          %s125 = sshll.u32 %s118, 4
          %s126 = int_to_ptr.vmem [resolvable:$true] %s125
          %128 = dma.hbm_to_vmem [thread:$0]  %s123, 128, %s126, %s115
        $region20: #{focal_loss.1} parent=15 // pred_fallthru
          _
        // Predicated region
        $region21: #{focal_loss.1} parent=15 // pred_check
          %p129 = pneg %p60
        $region22: #{focal_loss.1} parent=15 // pred_check_branch
          %131 = sbr.rel (%p129) target = $region24
        $region23: #{focal_loss.1} parent=15 // pred_region
          %s132 = sand.u32 %s50, 1
          %s133 = scalar_lea.sflag [#allocation5], %s132
          %s134 = sand.u32 %s50, 1
          %s135 = smul.addr %s134, 8
          %s136 = scalar_lea.vmem [#allocation4], %s135
          %s138 = ssub.s32 128, 128
          %139 = vsyncadd %s133, %s138
          %s140 = smul.addr %s14, 128
          %s141 = scalar_lea.hbm %s1, %s140
          %s143 = sshll.u32 %s136, 4
          %s144 = int_to_ptr.vmem [resolvable:$true] %s143
          %146 = dma.hbm_to_vmem [thread:$0]  %s141, 128, %s144, %s133
        $region24: #{focal_loss.1} parent=15 // pred_fallthru
          _
      $region16: #{focal_loss.1} parent=5 // pred_fallthru
        _
      %p147 = scmp.le.s32.totalorder 1, %s14
      %p148 = scmp.lt.s32.totalorder %s14, 3
      %p149 = pnand %p147, %p148
      %p150 = pneg %p149
      // Predicated region
      $region25: #{focal_loss.1} parent=5 // pred_check
        _
      $region26: #{focal_loss.1} parent=5 // pred_check_branch
        %152 = sbr.rel (%p149) target = $region28
      $region27: #{focal_loss.1} parent=5 // pred_region
        %s153 = ssub.s32 %s14, 1
        %s154 = sand.u32 %s27, 1
        %s155 = scalar_lea.sflag [#allocation3], %s154
        %s156 = sand.u32 %s27, 1
        %s157 = smul.addr %s156, 8
        %s158 = scalar_lea.vmem [#allocation2], %s157
        // Predicated region
        $region29: #{focal_loss.1} parent=27 // pred_check
          %p159 = pneg %p40
        $region30: #{focal_loss.1} parent=27 // pred_check_branch
          %161 = sbr.rel (%p159) target = $region32
        $region31: #{focal_loss.1} parent=27 // pred_region
          %162 = dma.done %s155, 128
        $region32: #{focal_loss.1} parent=27 // pred_fallthru
          _
        %s163 = sand.u32 %s53, 1
        %s164 = scalar_lea.sflag [#allocation5], %s163
        %s165 = sand.u32 %s53, 1
        %s166 = smul.addr %s165, 8
        %s167 = scalar_lea.vmem [#allocation4], %s166
        // Predicated region
        $region33: #{focal_loss.1} parent=27 // pred_check
          %p168 = pneg %p66
        $region34: #{focal_loss.1} parent=27 // pred_check_branch
          %170 = sbr.rel (%p168) target = $region36
        $region35: #{focal_loss.1} parent=27 // pred_region
          %171 = dma.done %s164, 128
        $region36: #{focal_loss.1} parent=27 // pred_fallthru
          _
        %s172 = sand.u32 %s27, 1
        %s173 = scalar_lea.sflag [#allocation3], %s172
        %s174 = sand.u32 %s27, 1
        %s175 = smul.addr %s174, 8
        %s176 = scalar_lea.vmem [#allocation2], %s175
        %p177 = pneg %p40
        %p178 = pneg %p37
        %s179 = sand.u32 %s53, 1
        %s180 = scalar_lea.sflag [#allocation5], %s179
        %s181 = sand.u32 %s53, 1
        %s182 = smul.addr %s181, 8
        %s183 = scalar_lea.vmem [#allocation4], %s182
        %p184 = pneg %p66
        %p185 = pneg %p63
        %p186 = pneg %p92
        %p187 = pneg %p89
        %p188 = scmp.lt.s32.totalorder %s19, 1
        %s189 = scalar_select %p188, %s19, 1
        %s190 = smul.addr %s189, 8
        %s191 = scalar_lea.vmem %s2, %s190
        %p192 = scmp.lt.s32.totalorder %s19, 1
        %s193 = scalar_select %p192, %s19, 1
        %s194 = smul.addr %s193, 8
        %s195 = scalar_lea.vmem %s2, %s194
        %v196 = vld [vmem:[%s158] sm:$0xff]
        %v197 = vld [vmem:[%s167] sm:$0xff]
        %198 = vmax.xlane.f32.xlu0 %v196
        %v199 = vpop.xlane.xlu0 %198
        %v200 = vsub.f32 %v196, %v199
        %v201 = vmul.f32 %v200, 1.442695
        %v202 = vpow.pop %v201
        %203 = vadd.xlane.f32.xlu0 %v202
        %v204 = vpop.xlane.xlu0 %203
        %v205 = vlog2.pop %v204
        %v206 = vmul.f32 %v205, 0.6931472
        %v207 = vsub.f32 %v200, %v206
        %v208 = vmul.f32 %v207, 1.442695
        %v209 = vpow.pop %v208
        %v210 = vsub.f32 1.0, %v209
        %v211 = vmul.f32 %v210, %v210
        %v212 = vsub.f32 0.0, %v211
        %v213 = vmul.f32 %v212, %v207
        %v214 = vmul.f32 %v213, %v197
        %215 = vadd.xlane.f32.xlu0 %v214
        %v216 = vpop.xlane.xlu0 %215
        %vm217 = vcmask 7168
        %218 = vst.msk [vmem:[%s195] sm:$0xff] %vm217, %v216
        %p219 = scmp.lt.s32.totalorder %s19, 1
        %s220 = scalar_select %p219, %s19, 1
        %s221 = smul.addr %s220, 8
        %s222 = scalar_lea.vmem %s2, %s221
        // Predicated region
        $region37: #{focal_loss.1} parent=27 // pred_check
          %p223 = pneg %p89
        $region38: #{focal_loss.1} parent=27 // pred_check_branch
          %225 = sbr.rel (%p223) target = $region40
        $region39: #{focal_loss.1} parent=27 // pred_region
          _
        $region40: #{focal_loss.1} parent=27 // pred_fallthru
          _
      $region28: #{focal_loss.1} parent=5 // pred_fallthru
        _
      %p226 = scmp.le.s32.totalorder 2, %s14
      // Predicated region
      $region41: #{focal_loss.1} parent=5 // pred_check
        %p227 = pneg %p226
      $region42: #{focal_loss.1} parent=5 // pred_check_branch
        %229 = sbr.rel (%p227) target = $region44
      $region43: #{focal_loss.1} parent=5 // pred_region
        %s230 = ssub.s32 %s14, 2
        // Predicated region
        $region45: #{focal_loss.1} parent=43 // pred_check
          %p231 = pneg %p95
        $region46: #{focal_loss.1} parent=43 // pred_check_branch
          %233 = sbr.rel (%p231) target = $region48
        $region47: #{focal_loss.1} parent=43 // pred_region
          %p234 = scmp.lt.s32.totalorder %s20, 1
          %s235 = scalar_select %p234, %s20, 1
          %s236 = smul.addr %s235, 8
          %s237 = scalar_lea.vmem %s2, %s236
        $region48: #{focal_loss.1} parent=43 // pred_fallthru
          _
      $region44: #{focal_loss.1} parent=5 // pred_fallthru
        _
    $region6: #{focal_loss.1} parent=1 // loop_footer
      %s18 = sadd.s32 1, %s14
    $region7: #{focal_loss.1} parent=1 // loop_footer_branch
      %13 = sbr.rel target = $region3
    $region8: #{focal_loss.1} parent=1 // loop_exit
      _
    %238 = vsyncpa [#allocation3], 1
    %s239 = scalar_lea.sflag [#allocation3], 1
    %240 = vsyncpa %s239, 1
    %241 = vsyncpa [#allocation5], 1
    %s242 = scalar_lea.sflag [#allocation5], 1
    %243 = vsyncpa %s242, 1

</llo_original>
